<compile_context>
chip_gen: v7x
topology: tpu7x:2x2x1
jax: 0.10.0
libtpu: 0.0.40
codegen_flags: <defaults>
</compile_context>

<pallas_src>
import jax
import jax.numpy as jnp
from jax.experimental import pallas as pl
from jax.experimental.pallas import tpu as pltpu

_LANE = 128
_MAX_TILE_COLS = 1024                   # widest lane-axis tile we use
_TARGET_BLOCK_BYTES = 4 * 1024 * 1024   # ~4 MiB/block (16 MiB with 2x double-buffer)
_VMEM_LIMIT_BYTES = 32 * 1024 * 1024    # explicit scoped-VMEM cap, safe on v5e/v6e/v7x


def _round_up(x: int, m: int) -> int:
    return ((x + m - 1) // m) * m


def _sublane_multiple(dtype) -> int:
    """Packed-sublane multiple: 8 for 4-byte, 16 for 2-byte, 32 for 1-byte dtypes."""
    itemsize = jnp.dtype(dtype).itemsize
    return max(8, 32 // max(1, itemsize))


def _spec_normalize_kernel(params_ref, x_ref, o_ref):
    # params_ref lives in SMEM: [db_min, db_max] as f32 scalars.
    db_min = params_ref[0]
    db_max = params_ref[1]
    inv_range = 1.0 / (db_max - db_min)
    x = x_ref[...]
    x = jnp.minimum(jnp.maximum(x, db_min), db_max)   # clamp to [db_min, db_max]
    o_ref[...] = ((x - db_min) * inv_range).astype(o_ref.dtype)


def _run_2d(x2d: jax.Array, params: jax.Array) -> jax.Array:
    """Run the elementwise kernel over a 2D view, tiling both axes."""
    rows, cols = x2d.shape
    dtype = x2d.dtype
    itemsize = jnp.dtype(dtype).itemsize
    sub = _sublane_multiple(dtype)

    # ---- lane (last-dim) tiling -------------------------------------------
    if cols % _LANE == 0:
        tile_cols = min(cols, _MAX_TILE_COLS)       # 128-multiple -> always legal
    else:
        tile_cols = cols                            # full last dim -> always legal
    padded_tile_cols = _round_up(tile_cols, _LANE)  # what the VMEM tile really holds

    # ---- sublane (first-dim) tiling: aim for ~_TARGET_BLOCK_BYTES blocks ---
    bytes_per_row = padded_tile_cols * itemsize
    tile_rows = max(sub, (_TARGET_BLOCK_BYTES // bytes_per_row) // sub * sub)

    if tile_rows >= rows:
        if rows > sub:
            # Whole row extent fits one block: still split into two sublane-
            # aligned row blocks so both v7x TensorCores get work.
            tile_rows = _round_up((rows + 1) // 2, sub)
        else:
            tile_rows = rows                        # tiny: one full-extent block
    else:
        nbr = pl.cdiv(rows, tile_rows)
        if nbr > 1 and nbr % 2 == 1:
            # Prefer an even number of row blocks (balanced megacore split).
            cand = _round_up(pl.cdiv(rows, nbr + 1), sub)
            if cand >= sub and pl.cdiv(rows, cand) % 2 == 0:
                tile_rows = cand

    grid = (pl.cdiv(rows, tile_rows), pl.cdiv(cols, tile_cols))
    block = (tile_rows, tile_cols)

    return pl.pallas_call(
        _spec_normalize_kernel,
        out_shape=jax.ShapeDtypeStruct((rows, cols), dtype),
        grid=grid,
        in_specs=[
            pl.BlockSpec(memory_space=pltpu.MemorySpace.SMEM),   # [db_min, db_max]
            pl.BlockSpec(block, lambda i, j: (i, j)),
        ],
        out_specs=pl.BlockSpec(block, lambda i, j: (i, j)),
        compiler_params=pltpu.CompilerParams(
            dimension_semantics=("parallel", "parallel"),
            vmem_limit_bytes=_VMEM_LIMIT_BYTES,
        ),
    )(params, x2d)


def spec_normalize(spectrogram: jax.Array, db_min: float, db_max: float) -> jax.Array:
    """Clip spectrogram to [db_min, db_max] and normalize linearly to [0, 1]."""
    if db_max == db_min:
        # Guard the 1/(db_max-db_min) division (would be inf/nan otherwise).
        raise ValueError("db_max must differ from db_min")

    orig_shape = spectrogram.shape
    n = spectrogram.size
    if n == 0:
        return spectrogram

    params = jnp.array([db_min, db_max], dtype=jnp.float32)
    itemsize = jnp.dtype(spectrogram.dtype).itemsize
    sub = _sublane_multiple(spectrogram.dtype)

    # Fast path: lane-dense slab with the widest 128-multiple lane axis that
    # divides the element count. Pure metadata reshape, no copy.
    if n % _LANE == 0:
        cols = _LANE
        for c in (_MAX_TILE_COLS, 512, 256, _LANE):
            if n % c == 0:
                cols = c
                break
        out2d = _run_2d(spectrogram.reshape(n // cols, cols), params)
        return out2d.reshape(orig_shape)

    # Fallback A: collapse trailing dims until the lane axis is >= 128 wide;
    # the block spans the full (non-128-multiple) last dim, rows are tiled.
    cols = 1
    for d in reversed(orig_shape):
        cols *= int(d)
        if cols >= _LANE:
            break
    rows = n // cols
    min_block_bytes = min(sub, rows) * _round_up(cols, _LANE) * itemsize
    if min_block_bytes <= _TARGET_BLOCK_BYTES:
        out2d = _run_2d(spectrogram.reshape(rows, cols), params)
        return out2d.reshape(orig_shape)

    # Fallback B (rare: huge non-128-divisible extent): pad the flat array once
    # in HBM to a 128 multiple, run the lane-dense tiled kernel, slice back.
    flat = spectrogram.reshape(n)
    padded_n = _round_up(n, _LANE)
    flat = jnp.pad(flat, (0, padded_n - n))
    cols = _LANE
    for c in (_MAX_TILE_COLS, 512, 256, _LANE):
        if padded_n % c == 0:
            cols = c
            break
    out2d = _run_2d(flat.reshape(padded_n // cols, cols), params)
    return out2d.reshape(padded_n)[:n].reshape(orig_shape)


if __name__ == "__main__":
    # SpecNormalize(db_min=-80.0, db_max=0.0): typical dB spectrogram range.
    db_min, db_max = -80.0, 0.0

    # (batch=2, channels=4, freq=16, time=16), values spanning beyond the clip range.
    x = jax.random.uniform(
        jax.random.PRNGKey(0), (2, 4, 16, 16), dtype=jnp.float32,
        minval=-120.0, maxval=20.0
    )
    y = jax.block_until_ready(spec_normalize(x, db_min, db_max))
    ref = (jnp.clip(x, db_min, db_max) - db_min) / (db_max - db_min)
    assert y.shape == x.shape and y.dtype == x.dtype
    assert jnp.max(jnp.abs(y - ref)) < 1e-6

    # Non-128-divisible fallback path (collapsed trailing dims, full-cols block).
    x_odd = jax.random.uniform(
        jax.random.PRNGKey(1), (2, 3, 5, 7), dtype=jnp.float32,
        minval=-120.0, maxval=20.0
    )
    y_odd = jax.block_until_ready(spec_normalize(x_odd, db_min, db_max))
    ref_odd = (jnp.clip(x_odd, db_min, db_max) - db_min) / (db_max - db_min)
    assert y_odd.shape == x_odd.shape
    assert jnp.max(jnp.abs(y_odd - ref_odd)) < 1e-6

    # Medium f32 case: exercises the >=2-row-block split (megacore) path.
    x_med = jax.random.uniform(
        jax.random.PRNGKey(2), (4, 8, 64, 128), dtype=jnp.float32,
        minval=-120.0, maxval=20.0
    )
    y_med = jax.block_until_ready(spec_normalize(x_med, db_min, db_max))
    ref_med = (jnp.clip(x_med, db_min, db_max) - db_min) / (db_max - db_min)
    assert jnp.max(jnp.abs(y_med - ref_med)) < 1e-6

    # bf16 case: exercises the dtype-aware sublane multiple (16 for bf16).
    x_bf16 = jax.random.uniform(
        jax.random.PRNGKey(3), (4, 8, 64, 128), dtype=jnp.float32,
        minval=-120.0, maxval=20.0
    ).astype(jnp.bfloat16)
    y_bf16 = jax.block_until_ready(spec_normalize(x_bf16, db_min, db_max))
    ref_bf16 = (jnp.clip(x_bf16.astype(jnp.float32), db_min, db_max) - db_min) / (
        db_max - db_min
    )
    assert y_bf16.dtype == jnp.bfloat16
    assert jnp.max(jnp.abs(y_bf16.astype(jnp.float32) - ref_bf16)) < 1e-2

    print("KERNEL_OK")
</pallas_src>

<mosaic_0001>
module attributes {stable_mosaic.version = 11 : i64} {
  func.func @_spec_normalize_kernel(%arg0: i32, %arg1: i32, %arg2: memref<2xf32, #tpu.memory_space<smem>>, %arg3: memref<2x1024xf32, #tpu.memory_space<vmem>>, %arg4: memref<2x1024xf32, #tpu.memory_space<vmem>>) attributes {dimension_semantics = [#tpu.dimension_semantics<parallel>, #tpu.dimension_semantics<parallel>], iteration_bounds = array<i64: 1, 1>, scalar_prefetch = 0 : i64, scratch_operands = 0 : i64, tpu.core_type = #tpu.core_type<tc>, window_params = [{transform_indices = @transform_0, window_bounds = array<i64: 2>}, {transform_indices = @transform_1, window_bounds = array<i64: 2, 1024>}, {transform_indices = @transform_2, window_bounds = array<i64: 2, 1024>}]} {
    %c0 = arith.constant 0 : index
    %0 = memref.load %arg2[%c0] : memref<2xf32, #tpu.memory_space<smem>>
    %c1 = arith.constant 1 : index
    %1 = memref.load %arg2[%c1] : memref<2xf32, #tpu.memory_space<smem>>
    %2 = arith.subf %1, %0 : f32
    %cst = arith.constant 1.000000e+00 : f32
    %3 = arith.divf %cst, %2 : f32
    %c0_0 = arith.constant 0 : index
    %c0_1 = arith.constant 0 : index
    %4 = vector.load %arg3[%c0_0, %c0_1] : memref<2x1024xf32, #tpu.memory_space<vmem>>, vector<2x1024xf32>
    %5 = vector.broadcast %0 : f32 to vector<2x1024xf32>
    %6 = arith.maximumf %4, %5 : vector<2x1024xf32>
    %7 = vector.broadcast %1 : f32 to vector<2x1024xf32>
    %8 = arith.minimumf %6, %7 : vector<2x1024xf32>
    %9 = vector.broadcast %0 : f32 to vector<2x1024xf32>
    %10 = arith.subf %8, %9 : vector<2x1024xf32>
    %11 = vector.broadcast %3 : f32 to vector<2x1024xf32>
    %12 = arith.mulf %10, %11 : vector<2x1024xf32>
    %c0_2 = arith.constant 0 : index
    %c0_3 = arith.constant 0 : index
    %13 = vector.load %arg4[%c0_2, %c0_3] : memref<2x1024xf32, #tpu.memory_space<vmem>>, vector<2x1024xf32>
    tpu.vector_store %arg4[%c0_2, %c0_3], %12 {strides = array<i32>} : memref<2x1024xf32, #tpu.memory_space<vmem>>, vector<2x1024xf32>,
    return
  }
  func.func @transform_0(%arg0: i32, %arg1: i32) -> i32 {
    %c0_i32 = arith.constant 0 : i32
    %c0_i32_0 = arith.constant 0 : i32
    return %c0_i32 : i32
  }
  func.func @transform_1(%arg0: i32, %arg1: i32) -> (i32, i32) {
    %c0_i32 = arith.constant 0 : i32
    return %arg0, %arg1 : i32, i32
  }
  func.func @transform_2(%arg0: i32, %arg1: i32) -> (i32, i32) {
    %c0_i32 = arith.constant 0 : i32
    return %arg0, %arg1 : i32, i32
  }
}

</mosaic_0001>

<llo_original>
// kernel: tpu_custom_call.1
$region0: #{tpu_custom_call.1}
  #allocation0 [shape = 'u32[]', space=smem, size = 0x4, offset = 0x4, fixed_abs, tag = 'smem constant byte address 0x4 - core index']
  #allocation1 [shape = 'u32[144,128]{1,0:T(1,128)}', space=vmem, size = 0x12000, scoped, tag = 'internal scratch']
  %s0 = inlined_call_operand.hbm [shape: f32[2], index: 0, kind: input, shape index: {}]
  %s1 = inlined_call_operand.hbm [shape: f32[2,1024], index: 1, kind: input, shape index: {}]
  %s2 = inlined_call_operand.hbm [shape: f32[2,1024], index: 2, kind: output, shape index: {}]
  %s3 = sld [smem:[#allocation0]]
  $region26: #{tpu_custom_call.1} parent=0
    _
  %s5 = ssub.s32 1, %s3
  %s6 = scalar_select 0, %s5, %s3
  $region1: #{tpu_custom_call.1} parent=0
    #allocation2 [shape = 'u8[512]{0}', space=smem, size = 0x200, scoped, tag = 'input window, operand 0, single buffered']
    #allocation3 [shape = 's32[1]{0}', space=sflag, size = 0x4, scoped, tag = 'scoped memory for tpu_custom_call.1']
    #allocation4 [shape = 's32[1]{0}', space=sflag, size = 0x4, scoped, tag = 'scoped memory for tpu_custom_call.1']
    #allocation5 [shape = 's32[1]{0}', space=sflag, size = 0x4, scoped, tag = 'scoped memory for tpu_custom_call.1']
    #allocation6 [shape = 'u8[8192]{0}', space=vmem, size = 0x2000, scoped, tag = 'input window, operand 1, single buffered']
    #allocation7 [shape = 'u8[8192]{0}', space=vmem, size = 0x2000, scoped, tag = 'output window, operand 0, single buffered']
    %7 = vsyncpa [#allocation5], 0
    %8 = vsyncpa [#allocation3], 0
    %9 = vsyncpa [#allocation4], 0
    // Predicated region
    $region2: #{tpu_custom_call.1} parent=1 // pred_check
      _
    $region3: #{tpu_custom_call.1} parent=1 // pred_check_branch
      %11 = sbr.rel (0) target = $region5
    $region4: #{tpu_custom_call.1} parent=1 // pred_region
      %s13 = ssub.s32 16, 16
      %14 = vsyncadd [#allocation5], %s13
      %17 = dma.hbm_to_smem %s0, 16, [#allocation2], [#allocation5]
    $region5: #{tpu_custom_call.1} parent=1 // pred_fallthru
      _
    // Predicated region
    $region6: #{tpu_custom_call.1} parent=1 // pred_check
      _
    $region7: #{tpu_custom_call.1} parent=1 // pred_check_branch
      %19 = sbr.rel (0) target = $region9
    $region8: #{tpu_custom_call.1} parent=1 // pred_region
      %s21 = ssub.s32 256, 256
      %22 = vsyncadd [#allocation3], %s21
      %s24 = sshll.u32 [#allocation6], 4
      %s25 = int_to_ptr.vmem [resolvable:$true] %s24
      %27 = dma.hbm_to_vmem [thread:$0]  %s1, 256, %s25, [#allocation3]
    $region9: #{tpu_custom_call.1} parent=1 // pred_fallthru
      _
    // Predicated region
    $region10: #{tpu_custom_call.1} parent=1 // pred_check
      _
    $region11: #{tpu_custom_call.1} parent=1 // pred_check_branch
      %29 = sbr.rel (0) target = $region13
    $region12: #{tpu_custom_call.1} parent=1 // pred_region
      %30 = dma.done [#allocation5], 16
    $region13: #{tpu_custom_call.1} parent=1 // pred_fallthru
      _
    // Predicated region
    $region14: #{tpu_custom_call.1} parent=1 // pred_check
      _
    $region15: #{tpu_custom_call.1} parent=1 // pred_check_branch
      %32 = sbr.rel (0) target = $region17
    $region16: #{tpu_custom_call.1} parent=1 // pred_region
      %33 = dma.done [#allocation3], 256
    $region17: #{tpu_custom_call.1} parent=1 // pred_fallthru
      _
    %34 = sfence
    %s35 = sld [smem:[#allocation2]]
    %s36 = sld [smem:[#allocation2 + $0x1]]
    %s37 = ssub.f32 %s36, %s35
    %v38 = vstv %s37
    %v39 = vrcp.pop %v38
    %s40 = vtos %v39
    %v41 = vld [vmem:[#allocation6] sm:$0xff]
    %v42 = vld [vmem:[#allocation6 + $0x8] sm:$0xff]
    %v43 = vstv %s35
    %v44 = vmax.f32 %v41, %v43
    %v45 = vmax.f32 %v42, %v43
    %v46 = vstv %s36
    %v47 = vmin.f32 %v44, %v46
    %v48 = vmin.f32 %v45, %v46
    %v49 = vsub.f32 %v47, %v43
    %v50 = vsub.f32 %v48, %v43
    %v51 = vstv %s40
    %v52 = vmul.f32 %v49, %v51
    %v53 = vmul.f32 %v50, %v51
    %54 = vst [vmem:[#allocation7] sm:$0xff] %v52
    %55 = vst [vmem:[#allocation7 + $0x8] sm:$0xff] %v53
    // Predicated region
    $region18: #{tpu_custom_call.1} parent=1 // pred_check
      _
    $region19: #{tpu_custom_call.1} parent=1 // pred_check_branch
      %57 = sbr.rel (0) target = $region21
    $region20: #{tpu_custom_call.1} parent=1 // pred_region
      %s59 = ssub.s32 256, 256
      %60 = vsyncadd [#allocation4], %s59
      %s62 = sshll.u32 [#allocation7], 4
      %s63 = int_to_ptr.vmem [resolvable:$true] %s62
      %65 = dma.vmem_to_hbm [thread:$0]  %s63, 256, %s2, [#allocation4]
    $region21: #{tpu_custom_call.1} parent=1 // pred_fallthru
      _
    // Predicated region
    $region22: #{tpu_custom_call.1} parent=1 // pred_check
      _
    $region23: #{tpu_custom_call.1} parent=1 // pred_check_branch
      %67 = sbr.rel (0) target = $region25
    $region24: #{tpu_custom_call.1} parent=1 // pred_region
      %68 = dma.done [#allocation4], 256
    $region25: #{tpu_custom_call.1} parent=1 // pred_fallthru
      _
    %69 = vsyncpa [#allocation3], 1
    %70 = vsyncpa [#allocation4], 1
    %71 = vsyncpa [#allocation5], 1

</llo_original>
